<compile_context>
chip_gen: v7x
topology: tpu7x:2x2x1
jax: 0.10.0
libtpu: 0.0.40
codegen_flags: <defaults>
</compile_context>

<pallas_src>
import jax
import jax.numpy as jnp
from jax.experimental import pallas as pl
from jax.experimental.pallas import tpu as pltpu

LOG_SIG_MAX = 2.0
LOG_SIG_MIN = -20.0


def gaussian_policy_kernel(xt_ref, w1_ref, b1_ref, w2_ref, b2_ref,
                           wm_ref, bm_ref, ws_ref, bs_ref,
                           mean_ref, log_std_ref):
    # Lane-dense: batch is the last (lane) axis everywhere.
    xt = xt_ref[...]                                                 # (ni, tb)
    # linear1 + ReLU:  (hd, ni) @ (ni, tb) -> (hd, tb)
    h1 = jnp.dot(w1_ref[...], xt, preferred_element_type=jnp.float32) + b1_ref[...]
    h1 = jnp.maximum(h1, 0.0)
    # linear2 + ReLU:  (hd, hd) @ (hd, tb) -> (hd, tb)
    h2 = jnp.dot(w2_ref[...], h1, preferred_element_type=jnp.float32) + b2_ref[...]
    h2 = jnp.maximum(h2, 0.0)
    # Heads: (na, hd) @ (hd, tb) -> (na, tb); both stores are lane-dense.
    mean = jnp.dot(wm_ref[...], h2, preferred_element_type=jnp.float32) + bm_ref[...]
    ls = jnp.dot(ws_ref[...], h2, preferred_element_type=jnp.float32) + bs_ref[...]
    mean_ref[...] = mean.astype(mean_ref.dtype)
    log_std_ref[...] = jnp.clip(ls, LOG_SIG_MIN, LOG_SIG_MAX).astype(log_std_ref.dtype)


def prepare_policy_params(params):
    """One-time transpose to the lane-dense (out_features, in_features) layout.

    Hoisted out of the per-step hot path (perf review): weights stay tiny
    (~6 KB) and VMEM-resident across the whole batch grid.
    """
    return {
        "w1_t": params["w1"].T,                # (hidden, num_inputs)
        "b1_t": params["b1"].reshape(-1, 1),   # (hidden, 1)
        "w2_t": params["w2"].T,                # (hidden, hidden)
        "b2_t": params["b2"].reshape(-1, 1),
        "wm_t": params["wm"].T,                # (num_actions, hidden)
        "bm_t": params["bm"].reshape(-1, 1),
        "ws_t": params["ws"].T,
        "bs_t": params["bs"].reshape(-1, 1),
    }


def gaussian_policy_forward(state, kparams, *, batch_tile=8192):
    """GaussianPolicy.forward as a single Pallas kernel.

    state:   (B, num_inputs) float32
    kparams: output of prepare_policy_params()
    returns: (mean, log_std), each (B, num_actions); log_std clamped to
             [LOG_SIG_MIN, LOG_SIG_MAX].

    Note: the tile-selection branch below needs a concrete (static) B.
    """
    B, num_inputs = state.shape
    hidden_dim = kparams["w1_t"].shape[0]
    num_actions = kparams["wm_t"].shape[0]

    # Batch on lanes.
    state_t = state.T                                   # (num_inputs, B)

    if B <= batch_tile:
        tb = B                      # single full block (always a legal block)
        grid = (1,)
    else:
        tb = batch_tile             # multiple of 128
        grid = (pl.cdiv(B, tb),)    # ragged last block: OOB writes are masked

    # Advisory cost: this kernel is DMA / per-step-overhead bound, not MXU.
    flops = 2 * B * (num_inputs * hidden_dim + hidden_dim * hidden_dim
                     + 2 * hidden_dim * num_actions)
    bytes_accessed = 4 * (B * num_inputs + 2 * B * num_actions
                          + hidden_dim * (num_inputs + hidden_dim + 2 * num_actions)
                          + 2 * hidden_dim + 2 * num_actions)

    def resident(shape):
        # Whole weight / bias stays in VMEM across all grid steps.
        return pl.BlockSpec(shape, lambda i: (0, 0))

    in_specs = [
        pl.BlockSpec((num_inputs, tb), lambda i: (0, i)),   # state^T: tiled on lanes
        resident(kparams["w1_t"].shape),
        resident(kparams["b1_t"].shape),
        resident(kparams["w2_t"].shape),
        resident(kparams["b2_t"].shape),
        resident(kparams["wm_t"].shape),
        resident(kparams["bm_t"].shape),
        resident(kparams["ws_t"].shape),
        resident(kparams["bs_t"].shape),
    ]
    out_specs = (
        pl.BlockSpec((num_actions, tb), lambda i: (0, i)),  # mean^T
        pl.BlockSpec((num_actions, tb), lambda i: (0, i)),  # log_std^T
    )
    out_shape = (
        jax.ShapeDtypeStruct((num_actions, B), jnp.float32),
        jax.ShapeDtypeStruct((num_actions, B), jnp.float32),
    )

    # TODO(synk): on v7x, verify "parallel" actually shards the batch grid
    # across both TensorCores; otherwise switch to pltpu.CORE_PARALLEL.
    mean_t, log_std_t = pl.pallas_call(
        gaussian_policy_kernel,
        out_shape=out_shape,
        grid=grid,
        in_specs=in_specs,
        out_specs=out_specs,
        compiler_params=pltpu.CompilerParams(
            dimension_semantics=("parallel",)),
        cost_estimate=pl.CostEstimate(flops=flops, transcendentals=0,
                                      bytes_accessed=bytes_accessed),
    )(state_t,
      kparams["w1_t"], kparams["b1_t"],
      kparams["w2_t"], kparams["b2_t"],
      kparams["wm_t"], kparams["bm_t"],
      kparams["ws_t"], kparams["bs_t"])

    # Tiny (num_actions, B) -> (B, num_actions) transposes; output HBM traffic
    # here is B*16 B per head, negligible vs. the state read.
    return mean_t.T, log_std_t.T


def xavier_uniform(key, fan_in, fan_out, dtype=jnp.float32):
    """torch.nn.init.xavier_uniform_ with gain=1, producing an (in, out) matrix."""
    limit = (6.0 / (fan_in + fan_out)) ** 0.5
    return jax.random.uniform(key, (fan_in, fan_out), dtype=dtype,
                              minval=-limit, maxval=limit)


def init_gaussian_policy_params(key, num_inputs, num_actions, hidden_dim):
    k1, k2, k3, k4 = jax.random.split(key, 4)
    return {
        "w1": xavier_uniform(k1, num_inputs, hidden_dim),
        "b1": jnp.zeros((1, hidden_dim), jnp.float32),
        "w2": xavier_uniform(k2, hidden_dim, hidden_dim),
        "b2": jnp.zeros((1, hidden_dim), jnp.float32),
        "wm": xavier_uniform(k3, hidden_dim, num_actions),
        "bm": jnp.zeros((1, num_actions), jnp.float32),
        "ws": xavier_uniform(k4, hidden_dim, num_actions),
        "bs": jnp.zeros((1, num_actions), jnp.float32),
    }


def reference_forward(state, p):
    """Pure-JAX reference of the PyTorch forward()."""
    h1 = jnp.maximum(state @ p["w1"] + p["b1"], 0.0)
    h2 = jnp.maximum(h1 @ p["w2"] + p["b2"], 0.0)
    mean = h2 @ p["wm"] + p["bm"]
    log_std = jnp.clip(h2 @ p["ws"] + p["bs"], LOG_SIG_MIN, LOG_SIG_MAX)
    return mean, log_std


if __name__ == "__main__":
    # Shapes consistent with the module: num_inputs=8, hidden=32, actions=4.
    batch, num_inputs, num_actions, hidden_dim = 2, 8, 4, 32

    key = jax.random.PRNGKey(0)
    pkey, skey, skey2 = jax.random.split(key, 3)
    params = init_gaussian_policy_params(pkey, num_inputs, num_actions, hidden_dim)
    kparams = prepare_policy_params(params)   # one-time layout prep

    # --- small-batch path (single full block, grid=(1,)) ---
    state = jax.random.normal(skey, (batch, num_inputs), jnp.float32)
    mean, log_std = gaussian_policy_forward(state, kparams)
    mean = jax.block_until_ready(mean)
    log_std = jax.block_until_ready(log_std)

    ref_mean, ref_log_std = reference_forward(state, params)
    assert mean.shape == (batch, num_actions)
    assert log_std.shape == (batch, num_actions)
    assert jnp.allclose(mean, ref_mean, atol=1e-5, rtol=1e-5)
    assert jnp.allclose(log_std, ref_log_std, atol=1e-5, rtol=1e-5)
    assert bool(jnp.all(log_std <= LOG_SIG_MAX)) and bool(jnp.all(log_std >= LOG_SIG_MIN))

    # --- large-batch path (cdiv grid, ragged last block, no padding) ---
    big_b = 1000
    big_state = jax.random.normal(skey2, (big_b, num_inputs), jnp.float32)
    big_mean, big_log_std = gaussian_policy_forward(big_state, kparams, batch_tile=256)
    big_mean = jax.block_until_ready(big_mean)
    big_log_std = jax.block_until_ready(big_log_std)
    ref_bm, ref_bls = reference_forward(big_state, params)
    assert big_mean.shape == (big_b, num_actions)
    assert big_log_std.shape == (big_b, num_actions)
    assert jnp.allclose(big_mean, ref_bm, atol=1e-5, rtol=1e-5)
    assert jnp.allclose(big_log_std, ref_bls, atol=1e-5, rtol=1e-5)

    # TODO(synk): sample() (rsample + tanh-squash log-prob) is stochastic policy
    # sampling, not part of forward(); left to plain JAX if needed.
    print("KERNEL_OK")
</pallas_src>

<mosaic_0001>
module attributes {stable_mosaic.version = 11 : i64} {
  func.func @gaussian_policy_kernel(%arg0: i32, %arg1: memref<8x2xf32, #tpu.memory_space<vmem>>, %arg2: memref<32x8xf32, #tpu.memory_space<vmem>>, %arg3: memref<32x1xf32, #tpu.memory_space<vmem>>, %arg4: memref<32x32xf32, #tpu.memory_space<vmem>>, %arg5: memref<32x1xf32, #tpu.memory_space<vmem>>, %arg6: memref<4x32xf32, #tpu.memory_space<vmem>>, %arg7: memref<4x1xf32, #tpu.memory_space<vmem>>, %arg8: memref<4x32xf32, #tpu.memory_space<vmem>>, %arg9: memref<4x1xf32, #tpu.memory_space<vmem>>, %arg10: memref<4x2xf32, #tpu.memory_space<vmem>>, %arg11: memref<4x2xf32, #tpu.memory_space<vmem>>) attributes {dimension_semantics = [#tpu.dimension_semantics<parallel>], iteration_bounds = array<i64: 1>, scalar_prefetch = 0 : i64, scratch_operands = 0 : i64, tpu.core_type = #tpu.core_type<tc>, window_params = [{transform_indices = @transform_0, window_bounds = array<i64: 8, 2>}, {pipeline_mode = #tpu.pipeline_mode<synchronous>, transform_indices = @transform_1, window_bounds = array<i64: 32, 8>}, {pipeline_mode = #tpu.pipeline_mode<synchronous>, transform_indices = @transform_2, window_bounds = array<i64: 32, 1>}, {pipeline_mode = #tpu.pipeline_mode<synchronous>, transform_indices = @transform_3, window_bounds = array<i64: 32, 32>}, {pipeline_mode = #tpu.pipeline_mode<synchronous>, transform_indices = @transform_4, window_bounds = array<i64: 32, 1>}, {pipeline_mode = #tpu.pipeline_mode<synchronous>, transform_indices = @transform_5, window_bounds = array<i64: 4, 32>}, {pipeline_mode = #tpu.pipeline_mode<synchronous>, transform_indices = @transform_6, window_bounds = array<i64: 4, 1>}, {pipeline_mode = #tpu.pipeline_mode<synchronous>, transform_indices = @transform_7, window_bounds = array<i64: 4, 32>}, {pipeline_mode = #tpu.pipeline_mode<synchronous>, transform_indices = @transform_8, window_bounds = array<i64: 4, 1>}, {transform_indices = @transform_9, window_bounds = array<i64: 4, 2>}, {transform_indices = @transform_10, window_bounds = array<i64: 4, 2>}]} {
    %c0 = arith.constant 0 : index
    %c0_0 = arith.constant 0 : index
    %0 = vector.load %arg1[%c0, %c0_0] : memref<8x2xf32, #tpu.memory_space<vmem>>, vector<8x2xf32>
    %c0_1 = arith.constant 0 : index
    %c0_2 = arith.constant 0 : index
    %1 = vector.load %arg2[%c0_1, %c0_2] : memref<32x8xf32, #tpu.memory_space<vmem>>, vector<32x8xf32>
    %cst = arith.constant dense<0.000000e+00> : vector<32x2xf32>
    %2 = tpu.matmul %1, %0, %cst {dimension_numbers = #tpu.dot_dimension_numbers<[1], [0], [0], [1], [0, 0, 1, 1], [], []>} : vector<32x8xf32>, vector<8x2xf32>, vector<32x2xf32> -> vector<32x2xf32>
    %c0_3 = arith.constant 0 : index
    %c0_4 = arith.constant 0 : index
    %3 = vector.load %arg3[%c0_3, %c0_4] : memref<32x1xf32, #tpu.memory_space<vmem>>, vector<32x1xf32>
    %4 = vector.broadcast %3 : vector<32x1xf32> to vector<32x2xf32>
    %5 = arith.addf %2, %4 : vector<32x2xf32>
    %cst_5 = arith.constant 0.000000e+00 : f32
    %6 = vector.broadcast %cst_5 : f32 to vector<32x2xf32>
    %7 = arith.maximumf %5, %6 : vector<32x2xf32>
    %c0_6 = arith.constant 0 : index
    %c0_7 = arith.constant 0 : index
    %8 = vector.load %arg4[%c0_6, %c0_7] : memref<32x32xf32, #tpu.memory_space<vmem>>, vector<32x32xf32>
    %cst_8 = arith.constant dense<0.000000e+00> : vector<32x2xf32>
    %9 = tpu.matmul %8, %7, %cst_8 {dimension_numbers = #tpu.dot_dimension_numbers<[1], [0], [0], [1], [0, 0, 1, 1], [], []>} : vector<32x32xf32>, vector<32x2xf32>, vector<32x2xf32> -> vector<32x2xf32>
    %c0_9 = arith.constant 0 : index
    %c0_10 = arith.constant 0 : index
    %10 = vector.load %arg5[%c0_9, %c0_10] : memref<32x1xf32, #tpu.memory_space<vmem>>, vector<32x1xf32>
    %11 = vector.broadcast %10 : vector<32x1xf32> to vector<32x2xf32>
    %12 = arith.addf %9, %11 : vector<32x2xf32>
    %cst_11 = arith.constant 0.000000e+00 : f32
    %13 = vector.broadcast %cst_11 : f32 to vector<32x2xf32>
    %14 = arith.maximumf %12, %13 : vector<32x2xf32>
    %c0_12 = arith.constant 0 : index
    %c0_13 = arith.constant 0 : index
    %15 = vector.load %arg6[%c0_12, %c0_13] : memref<4x32xf32, #tpu.memory_space<vmem>>, vector<4x32xf32>
    %cst_14 = arith.constant dense<0.000000e+00> : vector<4x2xf32>
    %16 = tpu.matmul %15, %14, %cst_14 {dimension_numbers = #tpu.dot_dimension_numbers<[1], [0], [0], [1], [0, 0, 1, 1], [], []>} : vector<4x32xf32>, vector<32x2xf32>, vector<4x2xf32> -> vector<4x2xf32>
    %c0_15 = arith.constant 0 : index
    %c0_16 = arith.constant 0 : index
    %17 = vector.load %arg7[%c0_15, %c0_16] : memref<4x1xf32, #tpu.memory_space<vmem>>, vector<4x1xf32>
    %18 = vector.broadcast %17 : vector<4x1xf32> to vector<4x2xf32>
    %19 = arith.addf %16, %18 : vector<4x2xf32>
    %c0_17 = arith.constant 0 : index
    %c0_18 = arith.constant 0 : index
    %20 = vector.load %arg8[%c0_17, %c0_18] : memref<4x32xf32, #tpu.memory_space<vmem>>, vector<4x32xf32>
    %cst_19 = arith.constant dense<0.000000e+00> : vector<4x2xf32>
    %21 = tpu.matmul %20, %14, %cst_19 {dimension_numbers = #tpu.dot_dimension_numbers<[1], [0], [0], [1], [0, 0, 1, 1], [], []>} : vector<4x32xf32>, vector<32x2xf32>, vector<4x2xf32> -> vector<4x2xf32>
    %c0_20 = arith.constant 0 : index
    %c0_21 = arith.constant 0 : index
    %22 = vector.load %arg9[%c0_20, %c0_21] : memref<4x1xf32, #tpu.memory_space<vmem>>, vector<4x1xf32>
    %23 = vector.broadcast %22 : vector<4x1xf32> to vector<4x2xf32>
    %24 = arith.addf %21, %23 : vector<4x2xf32>
    %c0_22 = arith.constant 0 : index
    %c0_23 = arith.constant 0 : index
    %25 = vector.load %arg10[%c0_22, %c0_23] : memref<4x2xf32, #tpu.memory_space<vmem>>, vector<4x2xf32>
    tpu.vector_store %arg10[%c0_22, %c0_23], %19 {strides = array<i32>} : memref<4x2xf32, #tpu.memory_space<vmem>>, vector<4x2xf32>,
    %cst_24 = arith.constant -2.000000e+01 : f32
    %cst_25 = arith.constant 2.000000e+00 : f32
    %26 = vector.broadcast %cst_24 : f32 to vector<4x2xf32>
    %27 = arith.maximumf %26, %24 : vector<4x2xf32>
    %28 = vector.broadcast %cst_25 : f32 to vector<4x2xf32>
    %29 = arith.minimumf %28, %27 : vector<4x2xf32>
    %c0_26 = arith.constant 0 : index
    %c0_27 = arith.constant 0 : index
    %30 = vector.load %arg11[%c0_26, %c0_27] : memref<4x2xf32, #tpu.memory_space<vmem>>, vector<4x2xf32>
    tpu.vector_store %arg11[%c0_26, %c0_27], %29 {strides = array<i32>} : memref<4x2xf32, #tpu.memory_space<vmem>>, vector<4x2xf32>,
    return
  }
  func.func @transform_0(%arg0: i32) -> (i32, i32) {
    %c0_i32 = arith.constant 0 : i32
    %c0_i32_0 = arith.constant 0 : i32
    return %c0_i32, %arg0 : i32, i32
  }
  func.func @transform_1(%arg0: i32) -> (i32, i32) {
    %c0_i32 = arith.constant 0 : i32
    %c0_i32_0 = arith.constant 0 : i32
    %c0_i32_1 = arith.constant 0 : i32
    return %c0_i32, %c0_i32_0 : i32, i32
  }
  func.func @transform_2(%arg0: i32) -> (i32, i32) {
    %c0_i32 = arith.constant 0 : i32
    %c0_i32_0 = arith.constant 0 : i32
    %c0_i32_1 = arith.constant 0 : i32
    return %c0_i32, %c0_i32_0 : i32, i32
  }
  func.func @transform_3(%arg0: i32) -> (i32, i32) {
    %c0_i32 = arith.constant 0 : i32
    %c0_i32_0 = arith.constant 0 : i32
    %c0_i32_1 = arith.constant 0 : i32
    return %c0_i32, %c0_i32_0 : i32, i32
  }
  func.func @transform_4(%arg0: i32) -> (i32, i32) {
    %c0_i32 = arith.constant 0 : i32
    %c0_i32_0 = arith.constant 0 : i32
    %c0_i32_1 = arith.constant 0 : i32
    return %c0_i32, %c0_i32_0 : i32, i32
  }
  func.func @transform_5(%arg0: i32) -> (i32, i32) {
    %c0_i32 = arith.constant 0 : i32
    %c0_i32_0 = arith.constant 0 : i32
    %c0_i32_1 = arith.constant 0 : i32
    return %c0_i32, %c0_i32_0 : i32, i32
  }
  func.func @transform_6(%arg0: i32) -> (i32, i32) {
    %c0_i32 = arith.constant 0 : i32
    %c0_i32_0 = arith.constant 0 : i32
    %c0_i32_1 = arith.constant 0 : i32
    return %c0_i32, %c0_i32_0 : i32, i32
  }
  func.func @transform_7(%arg0: i32) -> (i32, i32) {
    %c0_i32 = arith.constant 0 : i32
    %c0_i32_0 = arith.constant 0 : i32
    %c0_i32_1 = arith.constant 0 : i32
    return %c0_i32, %c0_i32_0 : i32, i32
  }
  func.func @transform_8(%arg0: i32) -> (i32, i32) {
    %c0_i32 = arith.constant 0 : i32
    %c0_i32_0 = arith.constant 0 : i32
    %c0_i32_1 = arith.constant 0 : i32
    return %c0_i32, %c0_i32_0 : i32, i32
  }
  func.func @transform_9(%arg0: i32) -> (i32, i32) {
    %c0_i32 = arith.constant 0 : i32
    %c0_i32_0 = arith.constant 0 : i32
    return %c0_i32, %arg0 : i32, i32
  }
  func.func @transform_10(%arg0: i32) -> (i32, i32) {
    %c0_i32 = arith.constant 0 : i32
    %c0_i32_0 = arith.constant 0 : i32
    return %c0_i32, %arg0 : i32, i32
  }
}

</mosaic_0001>

<llo_original>
// kernel: tpu_custom_call.1
$region0: #{tpu_custom_call.1}
  #allocation0 [shape = 'u32[]', space=smem, size = 0x4, offset = 0x4, fixed_abs, tag = 'smem constant byte address 0x4 - core index']
  #allocation1 [shape = 'u32[144,128]{1,0:T(1,128)}', space=vmem, size = 0x12000, scoped, tag = 'internal scratch']
  %s0 = inlined_call_operand.vmem [shape: f32[8,2], index: 0, kind: input, shape index: {}]
  %s1 = inlined_call_operand.vmem [shape: f32[32,8], index: 1, kind: input, shape index: {}]
  %s2 = inlined_call_operand.vmem [shape: f32[32,1], index: 2, kind: input, shape index: {}]
  %s3 = inlined_call_operand.vmem [shape: f32[32,32], index: 3, kind: input, shape index: {}]
  %s4 = inlined_call_operand.vmem [shape: f32[32,1], index: 4, kind: input, shape index: {}]
  %s5 = inlined_call_operand.vmem [shape: f32[4,32], index: 5, kind: input, shape index: {}]
  %s6 = inlined_call_operand.vmem [shape: f32[4,1], index: 6, kind: input, shape index: {}]
  %s7 = inlined_call_operand.vmem [shape: f32[4,32], index: 7, kind: input, shape index: {}]
  %s8 = inlined_call_operand.vmem [shape: f32[4,1], index: 8, kind: input, shape index: {}]
  %s9 = inlined_call_operand.vmem [shape: f32[4,2], index: 9, kind: output, shape index: {0}]
  %s10 = inlined_call_operand.vmem [shape: f32[4,2], index: 10, kind: output, shape index: {1}]
  %11 = xla_tuple %s9, %s10
  %s12 = sld [smem:[#allocation0]]
  $region54: #{tpu_custom_call.1} parent=0
    _
  %s14 = ssub.s32 1, %s12
  %s15 = scalar_select 0, %s14, %s12
  // Predicated region
  $region2: #{tpu_custom_call.1} parent=0 // pred_check
    _
  $region3: #{tpu_custom_call.1} parent=0 // pred_check_branch
    %17 = sbr.rel (0) target = $region5
  $region4: #{tpu_custom_call.1} parent=0 // pred_region
    _
  $region5: #{tpu_custom_call.1} parent=0 // pred_fallthru
    _
  // Predicated region
  $region6: #{tpu_custom_call.1} parent=0 // pred_check
    _
  $region7: #{tpu_custom_call.1} parent=0 // pred_check_branch
    %19 = sbr.rel (0) target = $region9
  $region8: #{tpu_custom_call.1} parent=0 // pred_region
    _
  $region9: #{tpu_custom_call.1} parent=0 // pred_fallthru
    _
  // Predicated region
  $region10: #{tpu_custom_call.1} parent=0 // pred_check
    _
  $region11: #{tpu_custom_call.1} parent=0 // pred_check_branch
    %21 = sbr.rel (0) target = $region13
  $region12: #{tpu_custom_call.1} parent=0 // pred_region
    _
  $region13: #{tpu_custom_call.1} parent=0 // pred_fallthru
    _
  // Predicated region
  $region14: #{tpu_custom_call.1} parent=0 // pred_check
    _
  $region15: #{tpu_custom_call.1} parent=0 // pred_check_branch
    %23 = sbr.rel (0) target = $region17
  $region16: #{tpu_custom_call.1} parent=0 // pred_region
    _
  $region17: #{tpu_custom_call.1} parent=0 // pred_fallthru
    _
  // Predicated region
  $region18: #{tpu_custom_call.1} parent=0 // pred_check
    _
  $region19: #{tpu_custom_call.1} parent=0 // pred_check_branch
    %25 = sbr.rel (0) target = $region21
  $region20: #{tpu_custom_call.1} parent=0 // pred_region
    _
  $region21: #{tpu_custom_call.1} parent=0 // pred_fallthru
    _
  // Predicated region
  $region22: #{tpu_custom_call.1} parent=0 // pred_check
    _
  $region23: #{tpu_custom_call.1} parent=0 // pred_check_branch
    %27 = sbr.rel (0) target = $region25
  $region24: #{tpu_custom_call.1} parent=0 // pred_region
    _
  $region25: #{tpu_custom_call.1} parent=0 // pred_fallthru
    _
  // Predicated region
  $region26: #{tpu_custom_call.1} parent=0 // pred_check
    _
  $region27: #{tpu_custom_call.1} parent=0 // pred_check_branch
    %29 = sbr.rel (0) target = $region29
  $region28: #{tpu_custom_call.1} parent=0 // pred_region
    _
  $region29: #{tpu_custom_call.1} parent=0 // pred_fallthru
    _
  // Predicated region
  $region30: #{tpu_custom_call.1} parent=0 // pred_check
    _
  $region31: #{tpu_custom_call.1} parent=0 // pred_check_branch
    %31 = sbr.rel (0) target = $region33
  $region32: #{tpu_custom_call.1} parent=0 // pred_region
    _
  $region33: #{tpu_custom_call.1} parent=0 // pred_fallthru
    _
  // Predicated region
  $region34: #{tpu_custom_call.1} parent=0 // pred_check
    _
  $region35: #{tpu_custom_call.1} parent=0 // pred_check_branch
    %33 = sbr.rel (0) target = $region37
  $region36: #{tpu_custom_call.1} parent=0 // pred_region
    _
  $region37: #{tpu_custom_call.1} parent=0 // pred_fallthru
    _
  %v34 = vld [vmem:[%s0] sm:$0xff]
  %v35 = vld [vmem:[%s1] sm:$0xff]
  %v36 = vld [vmem:[%s1 + $0x8] sm:$0xff]
  %v37 = vld [vmem:[%s1 + $0x10] sm:$0xff]
  %v38 = vld [vmem:[%s1 + $0x18] sm:$0xff]
  %v39 = vld [vmem:[%s2] sm:$0xff]
  %v40 = vld [vmem:[%s2 + $0x8] sm:$0xff]
  %v41 = vld [vmem:[%s2 + $0x10] sm:$0xff]
  %v42 = vld [vmem:[%s2 + $0x18] sm:$0xff]
  %44 = vset.pattern.permute.xlu0 0
  %45 = vperm.xlu0 %44, %v39
  %v46 = vpop.permute.xlu0 %45
  %49 = vset.pattern.permute.xlu0 0
  %50 = vperm.xlu0 %49, %v40
  %v51 = vpop.permute.xlu0 %50
  %54 = vset.pattern.permute.xlu0 0
  %55 = vperm.xlu0 %54, %v41
  %v56 = vpop.permute.xlu0 %55
  %59 = vset.pattern.permute.xlu0 0
  %60 = vperm.xlu0 %59, %v42
  %v61 = vpop.permute.xlu0 %60
  %vm63 = vcmask 64512
  %v65 = vsel %vm63, %v35, 0
  %v68 = vsel %vm63, %v36, 0
  %v71 = vsel %vm63, %v37, 0
  %v74 = vsel %vm63, %v38, 0
  %76 = vmatprep.subr.mxu0 0.0
  %77 = vmatpush1.msra.mxu0 %v34
  %78 = vmatprep.subr.mxu0 0.0
  %79 = vmatpush1.msra.mxu0 0.0
  %80 = vmatprep.subr.mxu0 0.0
  %81 = vmatpush1.msra.mxu0 0.0
  %82 = vmatprep.subr.mxu0 0.0
  %83 = vmatpush1.msra.mxu0 0.0
  %84 = vmatprep.subr.mxu0 0.0
  %85 = vmatpush1.msra.mxu0 0.0
  %86 = vmatprep.subr.mxu0 0.0
  %87 = vmatpush1.msra.mxu0 0.0
  %88 = vmatprep.subr.mxu0 0.0
  %89 = vmatpush1.msra.mxu0 0.0
  %90 = vmatprep.subr.mxu0 0.0
  %91 = vmatpush1.msra.mxu0 0.0
  %92 = vmatprep.subr.mxu0 0.0
  %93 = vmatpush1.msra.mxu0 0.0
  %94 = vmatprep.subr.mxu0 0.0
  %95 = vmatpush1.msra.mxu0 0.0
  %96 = vmatprep.subr.mxu0 0.0
  %97 = vmatpush1.msra.mxu0 0.0
  %98 = vmatprep.subr.mxu0 0.0
  %99 = vmatpush1.msra.mxu0 0.0
  %100 = vmatprep.subr.mxu0 0.0
  %101 = vmatpush1.msra.mxu0 0.0
  %102 = vmatprep.subr.mxu0 0.0
  %103 = vmatpush1.msra.mxu0 0.0
  %104 = vmatprep.subr.mxu0 0.0
  %105 = vmatpush1.msra.mxu0 0.0
  %106 = vmatprep.subr.mxu0 0.0
  %107 = vmatpush1.msra.mxu0 0.0
  %108 = vmatprep.subr.mxu0 0.0
  %109 = vmatpush1.msra.mxu0 0.0
  %110 = vmatprep.subr.mxu0 0.0
  %111 = vmatpush1.msra.mxu0 0.0
  %112 = vmatprep.subr.mxu0 0.0
  %113 = vmatpush1.msra.mxu0 0.0
  %114 = vmatprep.subr.mxu0 0.0
  %115 = vmatpush1.msra.mxu0 0.0
  %116 = vmatprep.subr.mxu0 0.0
  %117 = vmatpush1.msra.mxu0 0.0
  %118 = vmatprep.subr.mxu0 0.0
  %119 = vmatpush1.msra.mxu0 0.0
  %120 = vmatprep.subr.mxu0 0.0
  %121 = vmatpush1.msra.mxu0 0.0
  %122 = vmatprep.subr.mxu0 0.0
  %123 = vmatpush1.msra.mxu0 0.0
  %124 = vmatprep.subr.mxu0 0.0
  %125 = vmatpush1.msra.mxu0 0.0
  %126 = vmatprep.subr.mxu0 0.0
  %127 = vmatpush1.msra.mxu0 0.0
  %128 = vmatprep.subr.mxu0 0.0
  %129 = vmatpush1.msra.mxu0 0.0
  %130 = vmatprep.subr.mxu0 0.0
  %131 = vmatpush1.msra.mxu0 0.0
  %132 = vmatprep.subr.mxu0 0.0
  %133 = vmatpush1.msra.mxu0 0.0
  %134 = vmatprep.subr.mxu0 0.0
  %135 = vmatpush1.msra.mxu0 0.0
  %136 = vmatprep.subr.mxu0 0.0
  %137 = vmatpush1.msra.mxu0 0.0
  %138 = vmatprep.subr.mxu0 0.0
  %139 = vmatpush1.msra.mxu0 0.0
  %140 = vmatprep.mubr.f32.mxu0 0.0
  %141 = vmatmul.mubr.f32.gmra.mrb[0].mxu0 %v65
  %v142 = vpop.f32.mrb[0].mxu0
  %v143 = vadd.f32 %v46, %v142
  %v144 = vpop.f32.mrb[0].mxu0
  %145 = vmatprep.mubr.f32.mxu0 0.0
  %146 = vmatmul.mubr.f32.gmra.mrb[0].mxu0 %v68
  %v147 = vpop.f32.mrb[0].mxu0
  %v148 = vadd.f32 %v51, %v147
  %v149 = vpop.f32.mrb[0].mxu0
  %150 = vmatprep.mubr.f32.mxu0 0.0
  %151 = vmatmul.mubr.f32.gmra.mrb[0].mxu0 %v71
  %v152 = vpop.f32.mrb[0].mxu0
  %v153 = vadd.f32 %v56, %v152
  %v154 = vpop.f32.mrb[0].mxu0
  %155 = vmatprep.mubr.f32.mxu0 0.0
  %156 = vmatmul.mubr.f32.gmra.mrb[0].mxu0 %v74
  %v157 = vpop.f32.mrb[0].mxu0
  %v158 = vadd.f32 %v61, %v157
  %v159 = vpop.f32.mrb[0].mxu0
  %160 = vdwg.mxu0
  %v161 = vmax.f32 %v143, 0.0
  %v162 = vmax.f32 %v148, 0.0
  %v163 = vmax.f32 %v153, 0.0
  %v164 = vmax.f32 %v158, 0.0
  %v165 = vld [vmem:[%s3] sm:$0xff]
  %v166 = vld [vmem:[%s3 + $0x8] sm:$0xff]
  %v167 = vld [vmem:[%s3 + $0x10] sm:$0xff]
  %v168 = vld [vmem:[%s3 + $0x18] sm:$0xff]
  %v169 = vld [vmem:[%s4] sm:$0xff]
  %v170 = vld [vmem:[%s4 + $0x8] sm:$0xff]
  %v171 = vld [vmem:[%s4 + $0x10] sm:$0xff]
  %v172 = vld [vmem:[%s4 + $0x18] sm:$0xff]
  %174 = vset.pattern.permute.xlu0 0
  %175 = vperm.xlu0 %174, %v169
  %v176 = vpop.permute.xlu0 %175
  %179 = vset.pattern.permute.xlu0 0
  %180 = vperm.xlu0 %179, %v170
  %v181 = vpop.permute.xlu0 %180
  %184 = vset.pattern.permute.xlu0 0
  %185 = vperm.xlu0 %184, %v171
  %v186 = vpop.permute.xlu0 %185
  %189 = vset.pattern.permute.xlu0 0
  %190 = vperm.xlu0 %189, %v172
  %v191 = vpop.permute.xlu0 %190
  %vm193 = vcmask 261120
  %v195 = vsel %vm193, %v165, 0
  %v198 = vsel %vm193, %v166, 0
  %v201 = vsel %vm193, %v167, 0
  %v204 = vsel %vm193, %v168, 0
  %206 = vmatprep.subr.mxu0 0.0
  %207 = vmatpush1.msra.mxu0 %v161
  %208 = vmatprep.subr.mxu0 0.0
  %209 = vmatpush1.msra.mxu0 %v162
  %210 = vmatprep.subr.mxu0 0.0
  %211 = vmatpush1.msra.mxu0 %v163
  %212 = vmatprep.subr.mxu0 0.0
  %213 = vmatpush1.msra.mxu0 %v164
  %214 = vmatprep.subr.mxu0 0.0
  %215 = vmatpush1.msra.mxu0 0.0
  %216 = vmatprep.subr.mxu0 0.0
  %217 = vmatpush1.msra.mxu0 0.0
  %218 = vmatprep.subr.mxu0 0.0
  %219 = vmatpush1.msra.mxu0 0.0
  %220 = vmatprep.subr.mxu0 0.0
  %221 = vmatpush1.msra.mxu0 0.0
  %222 = vmatprep.subr.mxu0 0.0
  %223 = vmatpush1.msra.mxu0 0.0
  %224 = vmatprep.subr.mxu0 0.0
  %225 = vmatpush1.msra.mxu0 0.0
  %226 = vmatprep.subr.mxu0 0.0
  %227 = vmatpush1.msra.mxu0 0.0
  %228 = vmatprep.subr.mxu0 0.0
  %229 = vmatpush1.msra.mxu0 0.0
  %230 = vmatprep.subr.mxu0 0.0
  %231 = vmatpush1.msra.mxu0 0.0
  %232 = vmatprep.subr.mxu0 0.0
  %233 = vmatpush1.msra.mxu0 0.0
  %234 = vmatprep.subr.mxu0 0.0
  %235 = vmatpush1.msra.mxu0 0.0
  %236 = vmatprep.subr.mxu0 0.0
  %237 = vmatpush1.msra.mxu0 0.0
  %238 = vmatprep.subr.mxu0 0.0
  %239 = vmatpush1.msra.mxu0 0.0
  %240 = vmatprep.subr.mxu0 0.0
  %241 = vmatpush1.msra.mxu0 0.0
  %242 = vmatprep.subr.mxu0 0.0
  %243 = vmatpush1.msra.mxu0 0.0
  %244 = vmatprep.subr.mxu0 0.0
  %245 = vmatpush1.msra.mxu0 0.0
  %246 = vmatprep.subr.mxu0 0.0
  %247 = vmatpush1.msra.mxu0 0.0
  %248 = vmatprep.subr.mxu0 0.0
  %249 = vmatpush1.msra.mxu0 0.0
  %250 = vmatprep.subr.mxu0 0.0
  %251 = vmatpush1.msra.mxu0 0.0
  %252 = vmatprep.subr.mxu0 0.0
  %253 = vmatpush1.msra.mxu0 0.0
  %254 = vmatprep.subr.mxu0 0.0
  %255 = vmatpush1.msra.mxu0 0.0
  %256 = vmatprep.subr.mxu0 0.0
  %257 = vmatpush1.msra.mxu0 0.0
  %258 = vmatprep.subr.mxu0 0.0
  %259 = vmatpush1.msra.mxu0 0.0
  %260 = vmatprep.subr.mxu0 0.0
  %261 = vmatpush1.msra.mxu0 0.0
  %262 = vmatprep.subr.mxu0 0.0
  %263 = vmatpush1.msra.mxu0 0.0
  %264 = vmatprep.subr.mxu0 0.0
  %265 = vmatpush1.msra.mxu0 0.0
  %266 = vmatprep.subr.mxu0 0.0
  %267 = vmatpush1.msra.mxu0 0.0
  %268 = vmatprep.subr.mxu0 0.0
  %269 = vmatpush1.msra.mxu0 0.0
  %270 = vmatprep.mubr.f32.mxu0 0.0
  %271 = vmatmul.mubr.f32.gmra.mrb[0].mxu0 %v195
  %v272 = vpop.f32.mrb[0].mxu0
  %v273 = vadd.f32 %v176, %v272
  %v274 = vpop.f32.mrb[0].mxu0
  %275 = vmatprep.mubr.f32.mxu0 0.0
  %276 = vmatmul.mubr.f32.gmra.mrb[0].mxu0 %v198
  %v277 = vpop.f32.mrb[0].mxu0
  %v278 = vadd.f32 %v181, %v277
  %v279 = vpop.f32.mrb[0].mxu0
  %280 = vmatprep.mubr.f32.mxu0 0.0
  %281 = vmatmul.mubr.f32.gmra.mrb[0].mxu0 %v201
  %v282 = vpop.f32.mrb[0].mxu0
  %v283 = vadd.f32 %v186, %v282
  %v284 = vpop.f32.mrb[0].mxu0
  %285 = vmatprep.mubr.f32.mxu0 0.0
  %286 = vmatmul.mubr.f32.gmra.mrb[0].mxu0 %v204
  %v287 = vpop.f32.mrb[0].mxu0
  %v288 = vadd.f32 %v191, %v287
  %v289 = vpop.f32.mrb[0].mxu0
  %290 = vdwg.mxu0
  %v291 = vmax.f32 %v273, 0.0
  %v292 = vmax.f32 %v278, 0.0
  %v293 = vmax.f32 %v283, 0.0
  %v294 = vmax.f32 %v288, 0.0
  %v295 = vld [vmem:[%s5] sm:$0xf]
  %v296 = vld [vmem:[%s6] sm:$0xf]
  %298 = vset.pattern.permute.xlu0 0
  %299 = vperm.xlu0 %298, %v296
  %v300 = vpop.permute.xlu0 %299
  %v303 = vsel %vm193, %v295, 0
  %305 = vmatprep.subr.mxu0 0.0
  %306 = vmatpush1.msra.mxu0 %v291
  %307 = vmatprep.subr.mxu0 0.0
  %308 = vmatpush1.msra.mxu0 %v292
  %309 = vmatprep.subr.mxu0 0.0
  %310 = vmatpush1.msra.mxu0 %v293
  %311 = vmatprep.subr.mxu0 0.0
  %312 = vmatpush1.msra.mxu0 %v294
  %313 = vmatprep.subr.mxu0 0.0
  %314 = vmatpush1.msra.mxu0 0.0
  %315 = vmatprep.subr.mxu0 0.0
  %316 = vmatpush1.msra.mxu0 0.0
  %317 = vmatprep.subr.mxu0 0.0
  %318 = vmatpush1.msra.mxu0 0.0
  %319 = vmatprep.subr.mxu0 0.0
  %320 = vmatpush1.msra.mxu0 0.0
  %321 = vmatprep.subr.mxu0 0.0
  %322 = vmatpush1.msra.mxu0 0.0
  %323 = vmatprep.subr.mxu0 0.0
  %324 = vmatpush1.msra.mxu0 0.0
  %325 = vmatprep.subr.mxu0 0.0
  %326 = vmatpush1.msra.mxu0 0.0
  %327 = vmatprep.subr.mxu0 0.0
  %328 = vmatpush1.msra.mxu0 0.0
  %329 = vmatprep.subr.mxu0 0.0
  %330 = vmatpush1.msra.mxu0 0.0
  %331 = vmatprep.subr.mxu0 0.0
  %332 = vmatpush1.msra.mxu0 0.0
  %333 = vmatprep.subr.mxu0 0.0
  %334 = vmatpush1.msra.mxu0 0.0
  %335 = vmatprep.subr.mxu0 0.0
  %336 = vmatpush1.msra.mxu0 0.0
  %337 = vmatprep.subr.mxu0 0.0
  %338 = vmatpush1.msra.mxu0 0.0
  %339 = vmatprep.subr.mxu0 0.0
  %340 = vmatpush1.msra.mxu0 0.0
  %341 = vmatprep.subr.mxu0 0.0
  %342 = vmatpush1.msra.mxu0 0.0
  %343 = vmatprep.subr.mxu0 0.0
  %344 = vmatpush1.msra.mxu0 0.0
  %345 = vmatprep.subr.mxu0 0.0
  %346 = vmatpush1.msra.mxu0 0.0
  %347 = vmatprep.subr.mxu0 0.0
  %348 = vmatpush1.msra.mxu0 0.0
  %349 = vmatprep.subr.mxu0 0.0
  %350 = vmatpush1.msra.mxu0 0.0
  %351 = vmatprep.subr.mxu0 0.0
  %352 = vmatpush1.msra.mxu0 0.0
  %353 = vmatprep.subr.mxu0 0.0
  %354 = vmatpush1.msra.mxu0 0.0
  %355 = vmatprep.subr.mxu0 0.0
  %356 = vmatpush1.msra.mxu0 0.0
  %357 = vmatprep.subr.mxu0 0.0
  %358 = vmatpush1.msra.mxu0 0.0
  %359 = vmatprep.subr.mxu0 0.0
  %360 = vmatpush1.msra.mxu0 0.0
  %361 = vmatprep.subr.mxu0 0.0
  %362 = vmatpush1.msra.mxu0 0.0
  %363 = vmatprep.subr.mxu0 0.0
  %364 = vmatpush1.msra.mxu0 0.0
  %365 = vmatprep.subr.mxu0 0.0
  %366 = vmatpush1.msra.mxu0 0.0
  %367 = vmatprep.subr.mxu0 0.0
  %368 = vmatpush1.msra.mxu0 0.0
  %369 = vmatprep.mubr.f32.mxu0 0.0
  %370 = vmatmul.mubr.f32.gmra.mrb[0].mxu0 %v303
  %v371 = vpop.f32.mrb[0].mxu0
  %v372 = vadd.f32 %v300, %v371
  %v373 = vpop.f32.mrb[0].mxu0
  %374 = vdwg.mxu0
  %v375 = vld [vmem:[%s7] sm:$0xf]
  %v376 = vld [vmem:[%s8] sm:$0xf]
  %378 = vset.pattern.permute.xlu0 0
  %379 = vperm.xlu0 %378, %v376
  %v380 = vpop.permute.xlu0 %379
  %v383 = vsel %vm193, %v375, 0
  %385 = vmatprep.subr.mxu0 0.0
  %386 = vmatpush1.msra.mxu0 %v291
  %387 = vmatprep.subr.mxu0 0.0
  %388 = vmatpush1.msra.mxu0 %v292
  %389 = vmatprep.subr.mxu0 0.0
  %390 = vmatpush1.msra.mxu0 %v293
  %391 = vmatprep.subr.mxu0 0.0
  %392 = vmatpush1.msra.mxu0 %v294
  %393 = vmatprep.subr.mxu0 0.0
  %394 = vmatpush1.msra.mxu0 0.0
  %395 = vmatprep.subr.mxu0 0.0
  %396 = vmatpush1.msra.mxu0 0.0
  %397 = vmatprep.subr.mxu0 0.0
  %398 = vmatpush1.msra.mxu0 0.0
  %399 = vmatprep.subr.mxu0 0.0
  %400 = vmatpush1.msra.mxu0 0.0
  %401 = vmatprep.subr.mxu0 0.0
  %402 = vmatpush1.msra.mxu0 0.0
  %403 = vmatprep.subr.mxu0 0.0
  %404 = vmatpush1.msra.mxu0 0.0
  %405 = vmatprep.subr.mxu0 0.0
  %406 = vmatpush1.msra.mxu0 0.0
  %407 = vmatprep.subr.mxu0 0.0
  %408 = vmatpush1.msra.mxu0 0.0
  %409 = vmatprep.subr.mxu0 0.0
  %410 = vmatpush1.msra.mxu0 0.0
  %411 = vmatprep.subr.mxu0 0.0
  %412 = vmatpush1.msra.mxu0 0.0
  %413 = vmatprep.subr.mxu0 0.0
  %414 = vmatpush1.msra.mxu0 0.0
  %415 = vmatprep.subr.mxu0 0.0
  %416 = vmatpush1.msra.mxu0 0.0
  %417 = vmatprep.subr.mxu0 0.0
  %418 = vmatpush1.msra.mxu0 0.0
  %419 = vmatprep.subr.mxu0 0.0
  %420 = vmatpush1.msra.mxu0 0.0
  %421 = vmatprep.subr.mxu0 0.0
  %422 = vmatpush1.msra.mxu0 0.0
  %423 = vmatprep.subr.mxu0 0.0
  %424 = vmatpush1.msra.mxu0 0.0
  %425 = vmatprep.subr.mxu0 0.0
  %426 = vmatpush1.msra.mxu0 0.0
  %427 = vmatprep.subr.mxu0 0.0
  %428 = vmatpush1.msra.mxu0 0.0
  %429 = vmatprep.subr.mxu0 0.0
  %430 = vmatpush1.msra.mxu0 0.0
  %431 = vmatprep.subr.mxu0 0.0
  %432 = vmatpush1.msra.mxu0 0.0
  %433 = vmatprep.subr.mxu0 0.0
  %434 = vmatpush1.msra.mxu0 0.0
  %435 = vmatprep.subr.mxu0 0.0
  %436 = vmatpush1.msra.mxu0 0.0
  %437 = vmatprep.subr.mxu0 0.0
  %438 = vmatpush1.msra.mxu0 0.0
  %439 = vmatprep.subr.mxu0 0.0
  %440 = vmatpush1.msra.mxu0 0.0
  %441 = vmatprep.subr.mxu0 0.0
  %442 = vmatpush1.msra.mxu0 0.0
  %443 = vmatprep.subr.mxu0 0.0
  %444 = vmatpush1.msra.mxu0 0.0
  %445 = vmatprep.subr.mxu0 0.0
  %446 = vmatpush1.msra.mxu0 0.0
  %447 = vmatprep.subr.mxu0 0.0
  %448 = vmatpush1.msra.mxu0 0.0
  %449 = vmatprep.mubr.f32.mxu0 0.0
  %450 = vmatmul.mubr.f32.gmra.mrb[0].mxu0 %v383
  %v451 = vpop.f32.mrb[0].mxu0
  %v452 = vadd.f32 %v380, %v451
  %v453 = vpop.f32.mrb[0].mxu0
  %454 = vdwg.mxu0
  %vm455 = vcmask 11264
  %456 = vst.msk [vmem:[%s9] sm:$0xf] %vm455, %v372
  %v457 = vmax.f32 %v452, -20.0
  %v458 = vmin.f32 %v457, 2.0
  %459 = vst.msk [vmem:[%s10] sm:$0xf] %vm455, %v458
  // Predicated region
  $region38: #{tpu_custom_call.1} parent=0 // pred_check
    _
  $region39: #{tpu_custom_call.1} parent=0 // pred_check_branch
    %461 = sbr.rel (0) target = $region41
  $region40: #{tpu_custom_call.1} parent=0 // pred_region
    _
  $region41: #{tpu_custom_call.1} parent=0 // pred_fallthru
    _
  // Predicated region
  $region42: #{tpu_custom_call.1} parent=0 // pred_check
    _
  $region43: #{tpu_custom_call.1} parent=0 // pred_check_branch
    %463 = sbr.rel (0) target = $region45
  $region44: #{tpu_custom_call.1} parent=0 // pred_region
    _
  $region45: #{tpu_custom_call.1} parent=0 // pred_fallthru
    _
  // Predicated region
  $region46: #{tpu_custom_call.1} parent=0 // pred_check
    _
  $region47: #{tpu_custom_call.1} parent=0 // pred_check_branch
    %465 = sbr.rel (0) target = $region49
  $region48: #{tpu_custom_call.1} parent=0 // pred_region
    _
  $region49: #{tpu_custom_call.1} parent=0 // pred_fallthru
    _
  // Predicated region
  $region50: #{tpu_custom_call.1} parent=0 // pred_check
    _
  $region51: #{tpu_custom_call.1} parent=0 // pred_check_branch
    %467 = sbr.rel (0) target = $region53
  $region52: #{tpu_custom_call.1} parent=0 // pred_region
    _
  $region53: #{tpu_custom_call.1} parent=0 // pred_fallthru
    _

</llo_original>
